<compile_context>
chip_gen: v7x
topology: tpu7x:2x2x1
jax: 0.10.0
libtpu: 0.0.40
codegen_flags: <defaults>
</compile_context>

<pallas_src>
import functools

import jax
import jax.numpy as jnp
from jax import lax
from jax.experimental import pallas as pl
from jax.experimental.pallas import tpu as pltpu


def mlp_kernel(x_ref, w1_ref, b1_ref, w2_ref, b2_ref, w3_ref, b3_ref, o_ref,
               *, strip):
    """x_ref: [dim1, tn] bf16 (features on sublanes, batch tile on lanes).
    o_ref: [1, tn] f32 (lane-dense output row).  Weights are resident blocks.
    The tile is processed in `strip`-lane strips so per-strip live ranges fit
    comfortably in the 64-vreg file."""
    tn = x_ref.shape[1]
    sw = min(strip, tn)
    assert tn % sw == 0, "lane tile must be a multiple of the strip width"
    n_strips = tn // sw

    # Weights/biases loaded once per grid step (hoisted out of the strip loop).
    w1 = w1_ref[...]                     # bf16 [d2, d1]
    b1 = b1_ref[...]                     # f32  [d2, 1]
    w2 = w2_ref[...]                     # bf16 [d3, d2]
    b2 = b2_ref[...]                     # f32  [d3, 1]
    w3 = w3_ref[...]                     # f32  [d3, 1]
    b3 = b3_ref[0]                       # f32 scalar (SMEM)

    def strip_body(s, carry):
        col = pl.ds(s * sw, sw)
        x = x_ref[:, col]                                            # bf16 [d1, sw]

        # layer1: bf16 MXU matmul, f32 accumulate; tanh in bf16 (EUP).
        a1 = jnp.dot(w1, x, preferred_element_type=jnp.float32) + b1
        h1 = jnp.tanh(a1.astype(jnp.bfloat16))                       # bf16 [d2, sw]

        # layer2: single-pass bf16 MXU matmul (h1 stays bf16), f32 accumulate.
        a2 = jnp.dot(w2, h1, preferred_element_type=jnp.float32) + b2
        h2 = jnp.tanh(a2.astype(jnp.bfloat16)).astype(jnp.float32)   # f32 [d3, sw]

        # layer3 (dim3 -> 1): VPU multiply + sublane (XLU) reduce -> [1, sw].
        o_ref[:, col] = jnp.sum(h2 * w3, axis=0, keepdims=True) + b3
        return carry

    # Fully unrolled short loop: gives the LLO scheduler visibility while
    # keeping per-strip live ranges bounded.
    lax.fori_loop(0, n_strips, strip_body, 0, unroll=True)


def _choose_tiles(n, *, max_tile=4096, target_steps=4):
    """Pick (padded_n, lane_tile).

    Preference order: minimal batch padding, then at least `target_steps`
    grid steps (per-core pipelining depth), then the largest tile (fewest
    per-step overheads).  The step count is always even and >= 2 so both of
    v7x's TensorCores get equal work on the "parallel" axis, and every tile
    is a multiple of 128 lanes so loads/stores stay lane-dense.
    VMEM is never the constraint here (< 1 MiB per step even at tile 4096).
    """
    best = None
    tn = 128
    while True:
        steps = max(2, pl.cdiv(n, tn))
        if steps % 2:
            steps += 1
        padded = steps * tn
        key = (padded - n, steps < target_steps, -tn)
        if best is None or key < best[0]:
            best = (key, padded, tn)
        if tn >= max_tile:
            break
        tn *= 2
    return best[1], best[2]


def refined_mlses_forward_t(xt, params, *, strip=512, max_tile=4096):
    """Preferred entry point.

    xt: [dim1, N] activations in 'producer layout' (feature-major); bf16
        preferred (an f32 input is cast once, still without any transpose).
    Returns y: [N, 1] float32.
    """
    w1, b1, w2, b2, w3, b3 = params
    dim1, n = xt.shape
    dim2 = w1.shape[0]
    dim3 = w2.shape[0]

    if xt.dtype != jnp.bfloat16:
        xt = xt.astype(jnp.bfloat16)

    n_pad, tn = _choose_tiles(n, max_tile=max_tile)
    if n_pad != n:
        xt = jnp.pad(xt, ((0, 0), (0, n_pad - n)))

    grid = (n_pad // tn,)
    full = lambda shape: pl.BlockSpec(shape, lambda i: (0, 0))  # resident weights

    # Advisory cost hint for XLA scheduling around this tiny custom call.
    flops = 2 * n_pad * (dim1 * dim2 + dim2 * dim3 + dim3)
    transcendentals = n_pad * (dim2 + dim3)
    bytes_accessed = (n_pad * (2 * dim1 + 4)
                      + 2 * (dim1 * dim2 + dim2 * dim3)
                      + 4 * (dim2 + 2 * dim3 + 1))

    out = pl.pallas_call(
        functools.partial(mlp_kernel, strip=strip),
        out_shape=jax.ShapeDtypeStruct((1, n_pad), jnp.float32),
        grid_spec=pltpu.PrefetchScalarGridSpec(
            num_scalar_prefetch=0,
            grid=grid,
            in_specs=[
                pl.BlockSpec((dim1, tn), lambda i: (0, i)),   # x tile, lane-dense bf16
                full((dim2, dim1)),                           # W1 bf16 (resident)
                full((dim2, 1)),                              # b1 f32 column
                full((dim3, dim2)),                           # W2 bf16 (resident)
                full((dim3, 1)),                              # b2 f32 column
                full((dim3, 1)),                              # w3 f32 column
                pl.BlockSpec(memory_space=pltpu.MemorySpace.SMEM),  # b3 scalar
            ],
            out_specs=pl.BlockSpec((1, tn), lambda i: (0, i)),  # lane-dense out row
        ),
        compiler_params=pltpu.CompilerParams(
            dimension_semantics=("parallel",),
        ),
        cost_estimate=pl.CostEstimate(
            flops=flops,
            transcendentals=transcendentals,
            bytes_accessed=bytes_accessed,
        ),
    )(xt, w1, b1, w2, b2, w3, b3)

    # [1, N_pad] -> [N, 1]; pure layout plumbing (cheap reshape/slice).
    return out[0, :n].reshape(n, 1)


def refined_mlses_forward(x, params, **kw):
    """Module-native entry: x [N, dim1] float32 (as in the PyTorch module).

    NOTE: this pays one extra HBM pass for the layout change; prefer having
    the producer emit x in [dim1, N] bf16 and calling refined_mlses_forward_t.
    The cast happens before the transpose so the transpose moves bf16 bytes.
    """
    xt = jnp.asarray(x, jnp.bfloat16).T
    return refined_mlses_forward_t(xt, params, **kw)


def init_params(key, dim1, dim2, dim3):
    """torch.nn.Linear-style init (uniform +-1/sqrt(fan_in)) stored in the
    kernel's layout: W as [out, in] bf16, biases as f32 columns, layer3's
    weight as a [dim3, 1] f32 column and b3 as a shape-(1,) SMEM scalar."""
    ks = jax.random.split(key, 6)

    def lin(kw, kb, fan_in, fan_out):
        bound = 1.0 / (fan_in ** 0.5)
        w = jax.random.uniform(kw, (fan_out, fan_in), jnp.float32, -bound, bound)
        b = jax.random.uniform(kb, (fan_out,), jnp.float32, -bound, bound)
        return w, b

    w1, b1 = lin(ks[0], ks[1], dim1, dim2)
    w2, b2 = lin(ks[2], ks[3], dim2, dim3)
    w3, b3 = lin(ks[4], ks[5], dim3, 1)
    return (w1.astype(jnp.bfloat16), b1.reshape(dim2, 1),
            w2.astype(jnp.bfloat16), b2.reshape(dim3, 1),
            w3.reshape(dim3, 1), b3.reshape(1))


def _bf16_round(v):
    return v.astype(jnp.bfloat16).astype(jnp.float32)


def reference_forward(x, params):
    """Pure-JAX reference mirroring the kernel's rounding points (bf16 inputs,
    bf16 activations, f32 accumulation) so the tolerance stays tight."""
    w1, b1, w2, b2, w3, b3 = params
    w1f = w1.astype(jnp.float32)
    w2f = w2.astype(jnp.float32)
    xf = _bf16_round(x)
    a1 = xf @ w1f.T + b1.reshape(1, -1)
    h1 = _bf16_round(jnp.tanh(_bf16_round(a1)))
    a2 = h1 @ w2f.T + b2.reshape(1, -1)
    h2 = _bf16_round(jnp.tanh(_bf16_round(a2)))
    return h2 @ w3 + b3.reshape(1, 1)


if __name__ == "__main__":
    # Shapes consistent with the module: a batch of small feature vectors.
    dim1, dim2, dim3 = 16, 32, 32
    probe_radius = 1.4   # stored but unused in forward (matches PyTorch module)
    N = 4000             # padded to 4096 -> 4 grid steps of 1024 lanes (2 strips each)

    key = jax.random.PRNGKey(0)
    k_x, k_p = jax.random.split(key)

    # Producer emits the activation directly in feature-major bf16 layout
    # (logically x = xt.T with shape [N, dim1], exactly as the PyTorch module
    # consumes it) -> no extra HBM transpose pass before the kernel.
    xt = jax.random.normal(k_x, (dim1, N), jnp.float32).astype(jnp.bfloat16)
    params = init_params(k_p, dim1, dim2, dim3)

    y = refined_mlses_forward_t(xt, params)
    y = jax.block_until_ready(y)

    # Module-native view of the same data, for the reference and the
    # compatibility entry point.
    x = xt.astype(jnp.float32).T                      # [N, dim1]
    y_ref = reference_forward(x, params)

    assert y.shape == (N, 1)
    assert jnp.allclose(y, y_ref, atol=5e-2, rtol=5e-2), (
        f"mismatch vs JAX reference (max abs err {jnp.max(jnp.abs(y - y_ref))})")

    # Also exercise the module-native [N, dim1] wrapper (same kernel).
    y2 = jax.block_until_ready(refined_mlses_forward(x, params))
    assert jnp.allclose(y2, y_ref, atol=5e-2, rtol=5e-2)

    print("KERNEL_OK")
</pallas_src>

<mosaic_0001>
module attributes {stable_mosaic.version = 11 : i64} {
  func.func @mlp_kernel(%arg0: i32, %arg1: memref<16x1024xbf16, #tpu.memory_space<vmem>>, %arg2: memref<32x16xbf16, #tpu.memory_space<vmem>>, %arg3: memref<32x1xf32, #tpu.memory_space<vmem>>, %arg4: memref<32x32xbf16, #tpu.memory_space<vmem>>, %arg5: memref<32x1xf32, #tpu.memory_space<vmem>>, %arg6: memref<32x1xf32, #tpu.memory_space<vmem>>, %arg7: memref<1xf32, #tpu.memory_space<smem>>, %arg8: memref<1x1024xf32, #tpu.memory_space<vmem>>) attributes {dimension_semantics = [#tpu.dimension_semantics<parallel>], iteration_bounds = array<i64: 4>, scalar_prefetch = 0 : i64, scratch_operands = 0 : i64, tpu.core_type = #tpu.core_type<tc>, window_params = [{transform_indices = @transform_0, window_bounds = array<i64: 16, 1024>}, {pipeline_mode = #tpu.pipeline_mode<synchronous>, transform_indices = @transform_1, window_bounds = array<i64: 32, 16>}, {pipeline_mode = #tpu.pipeline_mode<synchronous>, transform_indices = @transform_2, window_bounds = array<i64: 32, 1>}, {pipeline_mode = #tpu.pipeline_mode<synchronous>, transform_indices = @transform_3, window_bounds = array<i64: 32, 32>}, {pipeline_mode = #tpu.pipeline_mode<synchronous>, transform_indices = @transform_4, window_bounds = array<i64: 32, 1>}, {pipeline_mode = #tpu.pipeline_mode<synchronous>, transform_indices = @transform_5, window_bounds = array<i64: 32, 1>}, {transform_indices = @transform_6, window_bounds = array<i64: 1>}, {transform_indices = @transform_7, window_bounds = array<i64: 1, 1024>}]} {
    %c0 = arith.constant 0 : index
    %c0_0 = arith.constant 0 : index
    %0 = vector.load %arg2[%c0, %c0_0] : memref<32x16xbf16, #tpu.memory_space<vmem>>, vector<32x16xbf16>
    %c0_1 = arith.constant 0 : index
    %c0_2 = arith.constant 0 : index
    %1 = vector.load %arg3[%c0_1, %c0_2] : memref<32x1xf32, #tpu.memory_space<vmem>>, vector<32x1xf32>
    %c0_3 = arith.constant 0 : index
    %c0_4 = arith.constant 0 : index
    %2 = vector.load %arg4[%c0_3, %c0_4] : memref<32x32xbf16, #tpu.memory_space<vmem>>, vector<32x32xbf16>
    %c0_5 = arith.constant 0 : index
    %c0_6 = arith.constant 0 : index
    %3 = vector.load %arg5[%c0_5, %c0_6] : memref<32x1xf32, #tpu.memory_space<vmem>>, vector<32x1xf32>
    %c0_7 = arith.constant 0 : index
    %c0_8 = arith.constant 0 : index
    %4 = vector.load %arg6[%c0_7, %c0_8] : memref<32x1xf32, #tpu.memory_space<vmem>>, vector<32x1xf32>
    %c0_9 = arith.constant 0 : index
    %5 = memref.load %arg7[%c0_9] : memref<1xf32, #tpu.memory_space<smem>>
    %c0_i32 = arith.constant 0 : i32
    %c512_i32 = arith.constant 512 : i32
    %6 = arith.muli %c0_i32, %c512_i32 : i32
    %c0_10 = arith.constant 0 : index
    %7 = arith.index_cast %6 : i32 to index
    %8 = vector.load %arg1[%c0_10, %7] : memref<16x1024xbf16, #tpu.memory_space<vmem>>, vector<16x512xbf16>
    %cst = arith.constant dense<0.000000e+00> : vector<32x512xf32>
    %9 = tpu.matmul %0, %8, %cst {dimension_numbers = #tpu.dot_dimension_numbers<[1], [0], [0], [1], [0, 0, 1, 1], [], []>} : vector<32x16xbf16>, vector<16x512xbf16>, vector<32x512xf32> -> vector<32x512xf32>
    %10 = vector.broadcast %1 : vector<32x1xf32> to vector<32x512xf32>
    %11 = arith.addf %9, %10 : vector<32x512xf32>
    %12 = arith.truncf %11 : vector<32x512xf32> to vector<32x512xbf16>
    %13 = math.tanh %12 : vector<32x512xbf16>
    %cst_11 = arith.constant dense<0.000000e+00> : vector<32x512xf32>
    %14 = tpu.matmul %2, %13, %cst_11 {dimension_numbers = #tpu.dot_dimension_numbers<[1], [0], [0], [1], [0, 0, 1, 1], [], []>} : vector<32x32xbf16>, vector<32x512xbf16>, vector<32x512xf32> -> vector<32x512xf32>
    %15 = vector.broadcast %3 : vector<32x1xf32> to vector<32x512xf32>
    %16 = arith.addf %14, %15 : vector<32x512xf32>
    %17 = arith.truncf %16 : vector<32x512xf32> to vector<32x512xbf16>
    %18 = math.tanh %17 : vector<32x512xbf16>
    %19 = arith.extf %18 : vector<32x512xbf16> to vector<32x512xf32>
    %20 = vector.broadcast %4 : vector<32x1xf32> to vector<32x512xf32>
    %21 = arith.mulf %19, %20 : vector<32x512xf32>
    %cst_12 = arith.constant dense<0.000000e+00> : vector<512xf32>
    %22 = vector.multi_reduction <add>, %21, %cst_12 [0] : vector<32x512xf32> to vector<512xf32>
    %23 = vector.shape_cast %22 : vector<512xf32> to vector<1x512xf32>
    %24 = vector.broadcast %5 : f32 to vector<1x512xf32>
    %25 = arith.addf %23, %24 : vector<1x512xf32>
    %c0_13 = arith.constant 0 : index
    %26 = arith.index_cast %6 : i32 to index
    %27 = vector.load %arg8[%c0_13, %26] : memref<1x1024xf32, #tpu.memory_space<vmem>>, vector<1x512xf32>
    tpu.vector_store %arg8[%c0_13, %26], %25 {strides = array<i32>} : memref<1x1024xf32, #tpu.memory_space<vmem>>, vector<1x512xf32>,
    %c1_i32 = arith.constant 1 : i32
    %c512_i32_14 = arith.constant 512 : i32
    %28 = arith.muli %c1_i32, %c512_i32_14 : i32
    %c0_15 = arith.constant 0 : index
    %29 = arith.index_cast %28 : i32 to index
    %30 = vector.load %arg1[%c0_15, %29] : memref<16x1024xbf16, #tpu.memory_space<vmem>>, vector<16x512xbf16>
    %cst_16 = arith.constant dense<0.000000e+00> : vector<32x512xf32>
    %31 = tpu.matmul %0, %30, %cst_16 {dimension_numbers = #tpu.dot_dimension_numbers<[1], [0], [0], [1], [0, 0, 1, 1], [], []>} : vector<32x16xbf16>, vector<16x512xbf16>, vector<32x512xf32> -> vector<32x512xf32>
    %32 = vector.broadcast %1 : vector<32x1xf32> to vector<32x512xf32>
    %33 = arith.addf %31, %32 : vector<32x512xf32>
    %34 = arith.truncf %33 : vector<32x512xf32> to vector<32x512xbf16>
    %35 = math.tanh %34 : vector<32x512xbf16>
    %cst_17 = arith.constant dense<0.000000e+00> : vector<32x512xf32>
    %36 = tpu.matmul %2, %35, %cst_17 {dimension_numbers = #tpu.dot_dimension_numbers<[1], [0], [0], [1], [0, 0, 1, 1], [], []>} : vector<32x32xbf16>, vector<32x512xbf16>, vector<32x512xf32> -> vector<32x512xf32>
    %37 = vector.broadcast %3 : vector<32x1xf32> to vector<32x512xf32>
    %38 = arith.addf %36, %37 : vector<32x512xf32>
    %39 = arith.truncf %38 : vector<32x512xf32> to vector<32x512xbf16>
    %40 = math.tanh %39 : vector<32x512xbf16>
    %41 = arith.extf %40 : vector<32x512xbf16> to vector<32x512xf32>
    %42 = vector.broadcast %4 : vector<32x1xf32> to vector<32x512xf32>
    %43 = arith.mulf %41, %42 : vector<32x512xf32>
    %cst_18 = arith.constant dense<0.000000e+00> : vector<512xf32>
    %44 = vector.multi_reduction <add>, %43, %cst_18 [0] : vector<32x512xf32> to vector<512xf32>
    %45 = vector.shape_cast %44 : vector<512xf32> to vector<1x512xf32>
    %46 = vector.broadcast %5 : f32 to vector<1x512xf32>
    %47 = arith.addf %45, %46 : vector<1x512xf32>
    %c0_19 = arith.constant 0 : index
    %48 = arith.index_cast %28 : i32 to index
    %49 = vector.load %arg8[%c0_19, %48] : memref<1x1024xf32, #tpu.memory_space<vmem>>, vector<1x512xf32>
    tpu.vector_store %arg8[%c0_19, %48], %47 {strides = array<i32>} : memref<1x1024xf32, #tpu.memory_space<vmem>>, vector<1x512xf32>,
    %c2_i32 = arith.constant 2 : i32
    return
  }
  func.func @transform_0(%arg0: i32) -> (i32, i32) {
    %c0_i32 = arith.constant 0 : i32
    %c0_i32_0 = arith.constant 0 : i32
    return %c0_i32, %arg0 : i32, i32
  }
  func.func @transform_1(%arg0: i32) -> (i32, i32) {
    %c0_i32 = arith.constant 0 : i32
    %c0_i32_0 = arith.constant 0 : i32
    %c0_i32_1 = arith.constant 0 : i32
    return %c0_i32, %c0_i32_0 : i32, i32
  }
  func.func @transform_2(%arg0: i32) -> (i32, i32) {
    %c0_i32 = arith.constant 0 : i32
    %c0_i32_0 = arith.constant 0 : i32
    %c0_i32_1 = arith.constant 0 : i32
    return %c0_i32, %c0_i32_0 : i32, i32
  }
  func.func @transform_3(%arg0: i32) -> (i32, i32) {
    %c0_i32 = arith.constant 0 : i32
    %c0_i32_0 = arith.constant 0 : i32
    %c0_i32_1 = arith.constant 0 : i32
    return %c0_i32, %c0_i32_0 : i32, i32
  }
  func.func @transform_4(%arg0: i32) -> (i32, i32) {
    %c0_i32 = arith.constant 0 : i32
    %c0_i32_0 = arith.constant 0 : i32
    %c0_i32_1 = arith.constant 0 : i32
    return %c0_i32, %c0_i32_0 : i32, i32
  }
  func.func @transform_5(%arg0: i32) -> (i32, i32) {
    %c0_i32 = arith.constant 0 : i32
    %c0_i32_0 = arith.constant 0 : i32
    %c0_i32_1 = arith.constant 0 : i32
    return %c0_i32, %c0_i32_0 : i32, i32
  }
  func.func @transform_6(%arg0: i32) -> i32 {
    %c0_i32 = arith.constant 0 : i32
    %c0_i32_0 = arith.constant 0 : i32
    return %c0_i32 : i32
  }
  func.func @transform_7(%arg0: i32) -> (i32, i32) {
    %c0_i32 = arith.constant 0 : i32
    %c0_i32_0 = arith.constant 0 : i32
    return %c0_i32, %arg0 : i32, i32
  }
}

</mosaic_0001>

<llo_original>
// kernel: tpu_custom_call.1
$region0: #{tpu_custom_call.1}
  #allocation0 [shape = 'u32[]', space=smem, size = 0x4, offset = 0x4, fixed_abs, tag = 'smem constant byte address 0x4 - core index']
  #allocation1 [shape = 'u32[144,128]{1,0:T(1,128)}', space=vmem, size = 0x12000, scoped, tag = 'internal scratch']
  #allocation2 [shape = 'f32[1]{0:T(128)S(6)}', space=smem, size = 0x200, scoped, tag = 'scoped memory for tpu_custom_call.1']
  %s0 = inlined_call_operand.hbm [shape: bf16[16,4096], index: 0, kind: input, shape index: {}]
  %s1 = inlined_call_operand.vmem [shape: bf16[32,16], index: 1, kind: input, shape index: {}]
  %s2 = inlined_call_operand.vmem [shape: f32[32,1], index: 2, kind: input, shape index: {}]
  %s3 = inlined_call_operand.vmem [shape: bf16[32,32], index: 3, kind: input, shape index: {}]
  %s4 = inlined_call_operand.vmem [shape: f32[32,1], index: 4, kind: input, shape index: {}]
  %s5 = inlined_call_operand.vmem [shape: f32[32,1], index: 5, kind: input, shape index: {}]
  %s6 = inlined_call_operand.<no memory space> [shape: f32[1], index: 6, kind: input, shape index: {}]
  %s7 = inlined_call_operand.hbm [shape: f32[1,4096], index: 7, kind: output, shape index: {}]
  %s8 = sld [smem:[#allocation0]]
  $region65: #{tpu_custom_call.1} parent=0
    _
  %s10 = ssub.s32 1, %s8
  %s11 = scalar_select 0, %s10, %s8
  %12 = sst [smem:[#allocation2]] %s6
  $region1: #{tpu_custom_call.1} parent=0
    #allocation3 [shape = 'u8[65536]{0}', space=vmem, size = 0x10000, scoped, tag = 'input window, operand 0']
    #allocation4 [shape = 's32[2]{0}', space=sflag, size = 0x8, scoped, tag = 'scoped memory for tpu_custom_call.1']
    #allocation5 [shape = 's32[2]{0}', space=sflag, size = 0x8, scoped, tag = 'scoped memory for tpu_custom_call.1']
    #allocation6 [shape = 'u8[8192]{0}', space=vmem, size = 0x2000, scoped, tag = 'output window, operand 0']
    %13 = vsyncpa [#allocation4], 0
    %s14 = scalar_lea.sflag [#allocation4], 1
    %15 = vsyncpa %s14, 0
    %16 = vsyncpa [#allocation5], 0
    %s17 = scalar_lea.sflag [#allocation5], 1
    %18 = vsyncpa %s17, 0
    loop: start=0, step=1, limit=6
    $region2: #{tpu_custom_call.1} parent=1 // loop_pre_header
      _
    $region3: #{tpu_custom_call.1} parent=1 // loop_header
      %s20 = sphi 0, %s24
      %p21 = scmp.ge.s32.totalorder %s20, 6
      %s30 = sphi 0, %s32
      %s33 = sphi 0, %s30
      %s34 = sphi 0, %s33
      %s50 = sphi 0, %s34
      %s54 = sphi 0, %s54
      %s56 = sphi 0, %s54
      %s57 = sphi 0, %s56
      %s71 = sphi 0, %s57
      %s75 = sphi 0, %s75
      %s77 = sphi 0, %s75
      %s78 = sphi 0, %s77
      %s92 = sphi 0, %s78
      %s96 = sphi 0, %s96
      %s98 = sphi 0, %s96
      %s99 = sphi 0, %s98
      %s113 = sphi 0, %s99
      %s117 = sphi 0, %s117
      %s119 = sphi 0, %s117
      %s120 = sphi 0, %s119
      %s134 = sphi 0, %s120
      %s138 = sphi 0, %s138
      %s140 = sphi 0, %s138
      %s141 = sphi 0, %s140
      %s155 = sphi 0, %s141
      %s159 = sphi 0, %s159
      %s161 = sphi 0, %s159
      %s162 = sphi 0, %s161
      %s176 = sphi 0, %s162
      %s182 = sphi 0, %s184
      %s185 = sphi 0, %s182
      %s186 = sphi 0, %s185
      %s202 = sphi 0, %s186
    $region4: #{tpu_custom_call.1} parent=1 // loop_header_branch
      %23 = sbr.rel (%p21) target = $region8
    $region5: #{tpu_custom_call.1} parent=1 // loop_body
      %s25 = ssub.s32 %s20, 1
      %s26 = ssub.s32 %s20, 2
      %s27 = sadd.s32 %s20, 1
      %s28 = ssub.s32 %s20, %s27
      %p29 = scmp.eq.s32.totalorder %s28, 0
      %s31 = sadd.s32 %s30, 1
      %s32 = scalar_select %p29, %s30, %s31
      %p35 = pneg %p29
      %p36 = scmp.eq.s32.totalorder %s20, 3
      %p37 = por %p35, %p36
      %p38 = scmp.ne.s32.totalorder %s30, %s33
      %p39 = scmp.eq.s32.totalorder %s20, 0
      %p40 = por %p38, %p39
      %p41 = scmp.ne.s32.totalorder %s30, %s33
      %p42 = scmp.eq.s32.totalorder %s25, 3
      %p43 = por %p41, %p42
      %p44 = scmp.ne.s32.totalorder %s33, %s34
      %p45 = scmp.eq.s32.totalorder %s25, 0
      %p46 = por %p44, %p45
      %p47 = scmp.ne.s32.totalorder %s33, %s34
      %p48 = scmp.eq.s32.totalorder %s26, 3
      %p49 = por %p47, %p48
      %p51 = scmp.ne.s32.totalorder %s34, %s50
      %p52 = scmp.eq.s32.totalorder %s26, 0
      %p53 = por %p51, %p52
      %s55 = sadd.s32 %s54, 1
      %p58 = scmp.eq.s32.totalorder %s20, 3
      %p59 = scmp.ne.s32.totalorder %s54, %s56
      %p60 = scmp.eq.s32.totalorder %s20, 0
      %p61 = por %p59, %p60
      %p62 = scmp.ne.s32.totalorder %s54, %s56
      %p63 = scmp.eq.s32.totalorder %s25, 3
      %p64 = por %p62, %p63
      %p65 = scmp.ne.s32.totalorder %s56, %s57
      %p66 = scmp.eq.s32.totalorder %s25, 0
      %p67 = por %p65, %p66
      %p68 = scmp.ne.s32.totalorder %s56, %s57
      %p69 = scmp.eq.s32.totalorder %s26, 3
      %p70 = por %p68, %p69
      %p72 = scmp.ne.s32.totalorder %s57, %s71
      %p73 = scmp.eq.s32.totalorder %s26, 0
      %p74 = por %p72, %p73
      %s76 = sadd.s32 %s75, 1
      %p79 = scmp.eq.s32.totalorder %s20, 3
      %p80 = scmp.ne.s32.totalorder %s75, %s77
      %p81 = scmp.eq.s32.totalorder %s20, 0
      %p82 = por %p80, %p81
      %p83 = scmp.ne.s32.totalorder %s75, %s77
      %p84 = scmp.eq.s32.totalorder %s25, 3
      %p85 = por %p83, %p84
      %p86 = scmp.ne.s32.totalorder %s77, %s78
      %p87 = scmp.eq.s32.totalorder %s25, 0
      %p88 = por %p86, %p87
      %p89 = scmp.ne.s32.totalorder %s77, %s78
      %p90 = scmp.eq.s32.totalorder %s26, 3
      %p91 = por %p89, %p90
      %p93 = scmp.ne.s32.totalorder %s78, %s92
      %p94 = scmp.eq.s32.totalorder %s26, 0
      %p95 = por %p93, %p94
      %s97 = sadd.s32 %s96, 1
      %p100 = scmp.eq.s32.totalorder %s20, 3
      %p101 = scmp.ne.s32.totalorder %s96, %s98
      %p102 = scmp.eq.s32.totalorder %s20, 0
      %p103 = por %p101, %p102
      %p104 = scmp.ne.s32.totalorder %s96, %s98
      %p105 = scmp.eq.s32.totalorder %s25, 3
      %p106 = por %p104, %p105
      %p107 = scmp.ne.s32.totalorder %s98, %s99
      %p108 = scmp.eq.s32.totalorder %s25, 0
      %p109 = por %p107, %p108
      %p110 = scmp.ne.s32.totalorder %s98, %s99
      %p111 = scmp.eq.s32.totalorder %s26, 3
      %p112 = por %p110, %p111
      %p114 = scmp.ne.s32.totalorder %s99, %s113
      %p115 = scmp.eq.s32.totalorder %s26, 0
      %p116 = por %p114, %p115
      %s118 = sadd.s32 %s117, 1
      %p121 = scmp.eq.s32.totalorder %s20, 3
      %p122 = scmp.ne.s32.totalorder %s117, %s119
      %p123 = scmp.eq.s32.totalorder %s20, 0
      %p124 = por %p122, %p123
      %p125 = scmp.ne.s32.totalorder %s117, %s119
      %p126 = scmp.eq.s32.totalorder %s25, 3
      %p127 = por %p125, %p126
      %p128 = scmp.ne.s32.totalorder %s119, %s120
      %p129 = scmp.eq.s32.totalorder %s25, 0
      %p130 = por %p128, %p129
      %p131 = scmp.ne.s32.totalorder %s119, %s120
      %p132 = scmp.eq.s32.totalorder %s26, 3
      %p133 = por %p131, %p132
      %p135 = scmp.ne.s32.totalorder %s120, %s134
      %p136 = scmp.eq.s32.totalorder %s26, 0
      %p137 = por %p135, %p136
      %s139 = sadd.s32 %s138, 1
      %p142 = scmp.eq.s32.totalorder %s20, 3
      %p143 = scmp.ne.s32.totalorder %s138, %s140
      %p144 = scmp.eq.s32.totalorder %s20, 0
      %p145 = por %p143, %p144
      %p146 = scmp.ne.s32.totalorder %s138, %s140
      %p147 = scmp.eq.s32.totalorder %s25, 3
      %p148 = por %p146, %p147
      %p149 = scmp.ne.s32.totalorder %s140, %s141
      %p150 = scmp.eq.s32.totalorder %s25, 0
      %p151 = por %p149, %p150
      %p152 = scmp.ne.s32.totalorder %s140, %s141
      %p153 = scmp.eq.s32.totalorder %s26, 3
      %p154 = por %p152, %p153
      %p156 = scmp.ne.s32.totalorder %s141, %s155
      %p157 = scmp.eq.s32.totalorder %s26, 0
      %p158 = por %p156, %p157
      %s160 = sadd.s32 %s159, 1
      %p163 = scmp.eq.s32.totalorder %s20, 3
      %p164 = scmp.ne.s32.totalorder %s159, %s161
      %p165 = scmp.eq.s32.totalorder %s20, 0
      %p166 = por %p164, %p165
      %p167 = scmp.ne.s32.totalorder %s159, %s161
      %p168 = scmp.eq.s32.totalorder %s25, 3
      %p169 = por %p167, %p168
      %p170 = scmp.ne.s32.totalorder %s161, %s162
      %p171 = scmp.eq.s32.totalorder %s25, 0
      %p172 = por %p170, %p171
      %p173 = scmp.ne.s32.totalorder %s161, %s162
      %p174 = scmp.eq.s32.totalorder %s26, 3
      %p175 = por %p173, %p174
      %p177 = scmp.ne.s32.totalorder %s162, %s176
      %p178 = scmp.eq.s32.totalorder %s26, 0
      %p179 = por %p177, %p178
      %s180 = ssub.s32 %s20, %s27
      %p181 = scmp.eq.s32.totalorder %s180, 0
      %s183 = sadd.s32 %s182, 1
      %s184 = scalar_select %p181, %s182, %s183
      %p187 = pneg %p181
      %p188 = scmp.eq.s32.totalorder %s20, 3
      %p189 = por %p187, %p188
      %p190 = scmp.ne.s32.totalorder %s182, %s185
      %p191 = scmp.eq.s32.totalorder %s20, 0
      %p192 = por %p190, %p191
      %p193 = scmp.ne.s32.totalorder %s182, %s185
      %p194 = scmp.eq.s32.totalorder %s25, 3
      %p195 = por %p193, %p194
      %p196 = scmp.ne.s32.totalorder %s185, %s186
      %p197 = scmp.eq.s32.totalorder %s25, 0
      %p198 = por %p196, %p197
      %p199 = scmp.ne.s32.totalorder %s185, %s186
      %p200 = scmp.eq.s32.totalorder %s26, 3
      %p201 = por %p199, %p200
      %p203 = scmp.ne.s32.totalorder %s186, %s202
      %p204 = scmp.eq.s32.totalorder %s26, 0
      %p205 = por %p203, %p204
      %p206 = scmp.le.s32.totalorder 1, %s20
      %p207 = scmp.lt.s32.totalorder %s20, 5
      %p208 = pnand %p206, %p207
      %p209 = pneg %p208
      // Predicated region
      $region9: #{tpu_custom_call.1} parent=5 // pred_check
        _
      $region10: #{tpu_custom_call.1} parent=5 // pred_check_branch
        %211 = sbr.rel (%p208) target = $region12
      $region11: #{tpu_custom_call.1} parent=5 // pred_region
        %s212 = ssub.s32 %s20, 1
        // Predicated region
        $region13: #{tpu_custom_call.1} parent=11 // pred_check
          %p213 = pneg %p67
        $region14: #{tpu_custom_call.1} parent=11 // pred_check_branch
          %215 = sbr.rel (%p213) target = $region16
        $region15: #{tpu_custom_call.1} parent=11 // pred_region
          _
        $region16: #{tpu_custom_call.1} parent=11 // pred_fallthru
          _
        // Predicated region
        $region17: #{tpu_custom_call.1} parent=11 // pred_check
          %p216 = pneg %p88
        $region18: #{tpu_custom_call.1} parent=11 // pred_check_branch
          %218 = sbr.rel (%p216) target = $region20
        $region19: #{tpu_custom_call.1} parent=11 // pred_region
          _
        $region20: #{tpu_custom_call.1} parent=11 // pred_fallthru
          _
        // Predicated region
        $region21: #{tpu_custom_call.1} parent=11 // pred_check
          %p219 = pneg %p109
        $region22: #{tpu_custom_call.1} parent=11 // pred_check_branch
          %221 = sbr.rel (%p219) target = $region24
        $region23: #{tpu_custom_call.1} parent=11 // pred_region
          _
        $region24: #{tpu_custom_call.1} parent=11 // pred_fallthru
          _
        // Predicated region
        $region25: #{tpu_custom_call.1} parent=11 // pred_check
          %p222 = pneg %p130
        $region26: #{tpu_custom_call.1} parent=11 // pred_check_branch
          %224 = sbr.rel (%p222) target = $region28
        $region27: #{tpu_custom_call.1} parent=11 // pred_region
          _
        $region28: #{tpu_custom_call.1} parent=11 // pred_fallthru
          _
        // Predicated region
        $region29: #{tpu_custom_call.1} parent=11 // pred_check
          %p225 = pneg %p151
        $region30: #{tpu_custom_call.1} parent=11 // pred_check_branch
          %227 = sbr.rel (%p225) target = $region32
        $region31: #{tpu_custom_call.1} parent=11 // pred_region
          _
        $region32: #{tpu_custom_call.1} parent=11 // pred_fallthru
          _
        // Predicated region
        $region33: #{tpu_custom_call.1} parent=11 // pred_check
          %p228 = pneg %p172
        $region34: #{tpu_custom_call.1} parent=11 // pred_check_branch
          %230 = sbr.rel (%p228) target = $region36
        $region35: #{tpu_custom_call.1} parent=11 // pred_region
          _
        $region36: #{tpu_custom_call.1} parent=11 // pred_fallthru
          _
      $region12: #{tpu_custom_call.1} parent=5 // pred_fallthru
        _
      %p231 = scmp.lt.s32.totalorder %s20, 4
      // Predicated region
      $region37: #{tpu_custom_call.1} parent=5 // pred_check
        %p232 = pneg %p231
      $region38: #{tpu_custom_call.1} parent=5 // pred_check_branch
        %234 = sbr.rel (%p232) target = $region40
      $region39: #{tpu_custom_call.1} parent=5 // pred_region
        // Predicated region
        $region41: #{tpu_custom_call.1} parent=39 // pred_check
          %p235 = pneg %p40
        $region42: #{tpu_custom_call.1} parent=39 // pred_check_branch
          %237 = sbr.rel (%p235) target = $region44
        $region43: #{tpu_custom_call.1} parent=39 // pred_region
          %s238 = sand.u32 %s30, 1
          %s239 = scalar_lea.sflag [#allocation4], %s238
          %s240 = sand.u32 %s30, 1
          %s241 = smul.addr %s240, 64
          %s242 = scalar_lea.vmem [#allocation3], %s241
          %s243 = smul.u32 8, %s20
          %s245 = ssub.s32 1024, 1024
          %246 = vsyncadd %s239, %s245
          %s247 = smul.addr %s243, 64
          %s248 = scalar_lea.hbm %s0, %s247
          %s249 = sshll.u32 %s242, 4
          %s250 = int_to_ptr.vmem [resolvable:$true] %s249
          %255 = dma.hbm_to_vmem [thread:$0]  %s248, 1024, %s250, %s239, 2048, 512, 32
        $region44: #{tpu_custom_call.1} parent=39 // pred_fallthru
          _
      $region40: #{tpu_custom_call.1} parent=5 // pred_fallthru
        _
      %p256 = scmp.le.s32.totalorder 1, %s20
      %p257 = scmp.lt.s32.totalorder %s20, 5
      %p258 = pnand %p256, %p257
      %p259 = pneg %p258
      // Predicated region
      $region45: #{tpu_custom_call.1} parent=5 // pred_check
        _
      $region46: #{tpu_custom_call.1} parent=5 // pred_check_branch
        %261 = sbr.rel (%p258) target = $region48
      $region47: #{tpu_custom_call.1} parent=5 // pred_region
        %s262 = ssub.s32 %s20, 1
        %s263 = sand.u32 %s33, 1
        %s264 = scalar_lea.sflag [#allocation4], %s263
        %s265 = sand.u32 %s33, 1
        %s266 = smul.addr %s265, 64
        %s267 = scalar_lea.vmem [#allocation3], %s266
        // Predicated region
        $region49: #{tpu_custom_call.1} parent=47 // pred_check
          %p268 = pneg %p46
        $region50: #{tpu_custom_call.1} parent=47 // pred_check_branch
          %270 = sbr.rel (%p268) target = $region52
        $region51: #{tpu_custom_call.1} parent=47 // pred_region
          %271 = dma.done %s264, 1024
        $region52: #{tpu_custom_call.1} parent=47 // pred_fallthru
          _
        %s272 = sand.u32 %s33, 1
        %s273 = scalar_lea.sflag [#allocation4], %s272
        %s274 = sand.u32 %s33, 1
        %s275 = smul.addr %s274, 64
        %s276 = scalar_lea.vmem [#allocation3], %s275
        %p277 = pneg %p46
        %p278 = pneg %p43
        %p279 = pneg %p67
        %p280 = pneg %p64
        %p281 = pneg %p88
        %p282 = pneg %p85
        %p283 = pneg %p109
        %p284 = pneg %p106
        %p285 = pneg %p130
        %p286 = pneg %p127
        %p287 = pneg %p151
        %p288 = pneg %p148
        %p289 = pneg %p172
        %p290 = pneg %p169
        %p291 = pneg %p198
        %p292 = pneg %p195
        %s293 = sand.u32 %s185, 1
        %s294 = scalar_lea.sflag [#allocation5], %s293
        %s295 = sand.u32 %s185, 1
        %s296 = smul.addr %s295, 8
        %s297 = scalar_lea.vmem [#allocation6], %s296
        %s298 = smul.u32 8, %s25
        %s299 = smul.u32 8, %s25
        %v301 = vld [vmem:[%s1] sm:$0xf]
        %v302 = vld [vmem:[%s1 + $0x4] sm:$0xf]
        %v303 = vld [vmem:[%s1 + $0x8] sm:$0xf]
        %v304 = vld [vmem:[%s1 + $0xc] sm:$0xf]
        %v305 = vld [vmem:[%s2] sm:$0xff]
        %v306 = vld [vmem:[%s2 + $0x8] sm:$0xff]
        %v307 = vld [vmem:[%s2 + $0x10] sm:$0xff]
        %v308 = vld [vmem:[%s2 + $0x18] sm:$0xff]
        %v309 = vld [vmem:[%s3] sm:$0xf]
        %v310 = vld [vmem:[%s3 + $0x4] sm:$0xf]
        %v311 = vld [vmem:[%s3 + $0x8] sm:$0xf]
        %v312 = vld [vmem:[%s3 + $0xc] sm:$0xf]
        %v313 = vld [vmem:[%s4] sm:$0xff]
        %v314 = vld [vmem:[%s4 + $0x8] sm:$0xff]
        %v315 = vld [vmem:[%s4 + $0x10] sm:$0xff]
        %v316 = vld [vmem:[%s4 + $0x18] sm:$0xff]
        %v317 = vld [vmem:[%s5] sm:$0xff]
        %v318 = vld [vmem:[%s5 + $0x8] sm:$0xff]
        %v319 = vld [vmem:[%s5 + $0x10] sm:$0xff]
        %v320 = vld [vmem:[%s5 + $0x18] sm:$0xff]
        %s321 = sld [smem:[#allocation2]]
        %v322 = vld [vmem:[%s267] sm:$0xff]
        %v323 = vld [vmem:[%s267 + $0x8] sm:$0xff]
        %v324 = vld [vmem:[%s267 + $0x20] sm:$0xff]
        %v325 = vld [vmem:[%s267 + $0x28] sm:$0xff]
        %327 = vset.pattern.permute.xlu0 0
        %328 = vperm.xlu0 %327, %v305
        %v329 = vpop.permute.xlu0 %328
        %332 = vset.pattern.permute.xlu0 0
        %333 = vperm.xlu0 %332, %v306
        %v334 = vpop.permute.xlu0 %333
        %337 = vset.pattern.permute.xlu0 0
        %338 = vperm.xlu0 %337, %v307
        %v339 = vpop.permute.xlu0 %338
        %342 = vset.pattern.permute.xlu0 0
        %343 = vperm.xlu0 %342, %v308
        %v344 = vpop.permute.xlu0 %343
        %v350 = vunpack.c.l.b16 %v301
        %v351 = vunpack.c.l.b16 %v302
        %v352 = vunpack.c.l.b16 %v303
        %v353 = vunpack.c.l.b16 %v304
        %v354 = vpack.c.b16 %v351, %v350
        %v355 = vpack.c.b16 %v353, %v352
        %v360 = vunpack.c.l.b16 %v322
        %v361 = vunpack.c.h.b16 %v322
        %v362 = vunpack.c.l.b16 %v323
        %v363 = vunpack.c.h.b16 %v323
        %v364 = vunpack.c.l.b16 %v324
        %v365 = vunpack.c.h.b16 %v324
        %v366 = vunpack.c.l.b16 %v325
        %v367 = vunpack.c.h.b16 %v325
        %v368 = vpack.c.b16 %v364, %v360
        %v369 = vpack.c.b16 %v365, %v361
        %v370 = vpack.c.b16 %v366, %v362
        %v371 = vpack.c.b16 %v367, %v363
        %vm376 = vcmask 130048
        %v378 = vsel %vm376, %v354, 0
        %v381 = vsel %vm376, %v355, 0
        %383 = vmatprep.subr.bf16.mxu0 %v369
        %384 = vmatpush1.bf16.msra.mxu0 %v368
        %385 = vmatprep.subr.bf16.mxu0 0
        %386 = vmatpush1.bf16.msra.mxu0 0
        %387 = vmatprep.subr.bf16.mxu0 0
        %388 = vmatpush1.bf16.msra.mxu0 0
        %389 = vmatprep.subr.bf16.mxu0 0
        %390 = vmatpush1.bf16.msra.mxu0 0
        %391 = vmatprep.subr.bf16.mxu0 0
        %392 = vmatpush1.bf16.msra.mxu0 0
        %393 = vmatprep.subr.bf16.mxu0 0
        %394 = vmatpush1.bf16.msra.mxu0 0
        %395 = vmatprep.subr.bf16.mxu0 0
        %396 = vmatpush1.bf16.msra.mxu0 0
        %397 = vmatprep.subr.bf16.mxu0 0
        %398 = vmatpush1.bf16.msra.mxu0 0
        %399 = vmatprep.subr.bf16.mxu0 0
        %400 = vmatpush1.bf16.msra.mxu0 0
        %401 = vmatprep.subr.bf16.mxu0 0
        %402 = vmatpush1.bf16.msra.mxu0 0
        %403 = vmatprep.subr.bf16.mxu0 0
        %404 = vmatpush1.bf16.msra.mxu0 0
        %405 = vmatprep.subr.bf16.mxu0 0
        %406 = vmatpush1.bf16.msra.mxu0 0
        %407 = vmatprep.subr.bf16.mxu0 0
        %408 = vmatpush1.bf16.msra.mxu0 0
        %409 = vmatprep.subr.bf16.mxu0 0
        %410 = vmatpush1.bf16.msra.mxu0 0
        %411 = vmatprep.subr.bf16.mxu0 0
        %412 = vmatpush1.bf16.msra.mxu0 0
        %413 = vmatprep.subr.bf16.mxu0 0
        %414 = vmatpush1.bf16.msra.mxu0 0
        %415 = vmatprep.mubr.bf16.mxu0 0
        %416 = vmatmul.mubr.bf16.gmra.mrb[0].mxu0 %v378
        %v417 = vpop.f32.mrb[0].mxu0
        %v418 = vadd.f32 %v329, %v417
        %v419 = vpop.f32.mrb[0].mxu0
        %v420 = vadd.f32 %v329, %v419
        %v421 = vpop.f32.mrb[0].mxu0
        %v422 = vadd.f32 %v334, %v421
        %v423 = vpop.f32.mrb[0].mxu0
        %v424 = vadd.f32 %v334, %v423
        %425 = vmatprep.mubr.bf16.mxu0 0
        %426 = vmatmul.mubr.bf16.gmra.mrb[0].mxu0 %v381
        %v427 = vpop.f32.mrb[0].mxu0
        %v428 = vadd.f32 %v339, %v427
        %v429 = vpop.f32.mrb[0].mxu0
        %v430 = vadd.f32 %v339, %v429
        %v431 = vpop.f32.mrb[0].mxu0
        %v432 = vadd.f32 %v344, %v431
        %v433 = vpop.f32.mrb[0].mxu0
        %v434 = vadd.f32 %v344, %v433
        %435 = vdwg.mxu0
        %436 = vmatprep.subr.bf16.mxu0 %v371
        %437 = vmatpush1.bf16.msra.mxu0 %v370
        %438 = vmatprep.subr.bf16.mxu0 0
        %439 = vmatpush1.bf16.msra.mxu0 0
        %440 = vmatprep.subr.bf16.mxu0 0
        %441 = vmatpush1.bf16.msra.mxu0 0
        %442 = vmatprep.subr.bf16.mxu0 0
        %443 = vmatpush1.bf16.msra.mxu0 0
        %444 = vmatprep.subr.bf16.mxu0 0
        %445 = vmatpush1.bf16.msra.mxu0 0
        %446 = vmatprep.subr.bf16.mxu0 0
        %447 = vmatpush1.bf16.msra.mxu0 0
        %448 = vmatprep.subr.bf16.mxu0 0
        %449 = vmatpush1.bf16.msra.mxu0 0
        %450 = vmatprep.subr.bf16.mxu0 0
        %451 = vmatpush1.bf16.msra.mxu0 0
        %452 = vmatprep.subr.bf16.mxu0 0
        %453 = vmatpush1.bf16.msra.mxu0 0
        %454 = vmatprep.subr.bf16.mxu0 0
        %455 = vmatpush1.bf16.msra.mxu0 0
        %456 = vmatprep.subr.bf16.mxu0 0
        %457 = vmatpush1.bf16.msra.mxu0 0
        %458 = vmatprep.subr.bf16.mxu0 0
        %459 = vmatpush1.bf16.msra.mxu0 0
        %460 = vmatprep.subr.bf16.mxu0 0
        %461 = vmatpush1.bf16.msra.mxu0 0
        %462 = vmatprep.subr.bf16.mxu0 0
        %463 = vmatpush1.bf16.msra.mxu0 0
        %464 = vmatprep.subr.bf16.mxu0 0
        %465 = vmatpush1.bf16.msra.mxu0 0
        %466 = vmatprep.subr.bf16.mxu0 0
        %467 = vmatpush1.bf16.msra.mxu0 0
        %468 = vmatprep.mubr.bf16.mxu0 0
        %469 = vmatmul.mubr.bf16.gmra.mrb[0].mxu0 %v378
        %v470 = vpop.f32.mrb[0].mxu0
        %v471 = vadd.f32 %v329, %v470
        %v472 = vpop.f32.mrb[0].mxu0
        %v473 = vadd.f32 %v329, %v472
        %v474 = vpop.f32.mrb[0].mxu0
        %v475 = vadd.f32 %v334, %v474
        %v476 = vpop.f32.mrb[0].mxu0
        %v477 = vadd.f32 %v334, %v476
        %478 = vmatprep.mubr.bf16.mxu0 0
        %479 = vmatmul.mubr.bf16.gmra.mrb[0].mxu0 %v381
        %v480 = vpop.f32.mrb[0].mxu0
        %v481 = vadd.f32 %v339, %v480
        %v482 = vpop.f32.mrb[0].mxu0
        %v483 = vadd.f32 %v339, %v482
        %v484 = vpop.f32.mrb[0].mxu0
        %v485 = vadd.f32 %v344, %v484
        %v486 = vpop.f32.mrb[0].mxu0
        %v487 = vadd.f32 %v344, %v486
        %488 = vdwg.mxu0
        %v489 = vpack.c.bf16 %v422, %v418
        %v490 = vpack.c.bf16 %v424, %v420
        %v491 = vpack.c.bf16 %v475, %v471
        %v492 = vpack.c.bf16 %v477, %v473
        %v493 = vpack.c.bf16 %v432, %v428
        %v494 = vpack.c.bf16 %v434, %v430
        %v495 = vpack.c.bf16 %v485, %v481
        %v496 = vpack.c.bf16 %v487, %v483
        %v497 = vtanh.bf16.pop %v489
        %v498 = vtanh.bf16.pop %v490
        %v499 = vtanh.bf16.pop %v491
        %v500 = vtanh.bf16.pop %v492
        %v501 = vtanh.bf16.pop %v493
        %v502 = vtanh.bf16.pop %v494
        %v503 = vtanh.bf16.pop %v495
        %v504 = vtanh.bf16.pop %v496
        %506 = vset.pattern.permute.xlu0 0
        %507 = vperm.xlu0 %506, %v313
        %v508 = vpop.permute.xlu0 %507
        %511 = vset.pattern.permute.xlu0 0
        %512 = vperm.xlu0 %511, %v314
        %v513 = vpop.permute.xlu0 %512
        %516 = vset.pattern.permute.xlu0 0
        %517 = vperm.xlu0 %516, %v315
        %v518 = vpop.permute.xlu0 %517
        %521 = vset.pattern.permute.xlu0 0
        %522 = vperm.xlu0 %521, %v316
        %v523 = vpop.permute.xlu0 %522
        %v529 = vunpack.c.l.b16 %v309
        %v530 = vunpack.c.l.b16 %v310
        %v531 = vunpack.c.l.b16 %v311
        %v532 = vunpack.c.l.b16 %v312
        %v533 = vpack.c.b16 %v530, %v529
        %v534 = vpack.c.b16 %v532, %v531
        %vm535 = vcmask 261120
        %v537 = vsel %vm535, %v533, 0
        %v540 = vsel %vm535, %v534, 0
        %542 = vmatprep.subr.bf16.mxu0 %v498
        %543 = vmatpush1.bf16.msra.mxu0 %v497
        %544 = vmatprep.subr.bf16.mxu0 %v502
        %545 = vmatpush1.bf16.msra.mxu0 %v501
        %546 = vmatprep.subr.bf16.mxu0 0
        %547 = vmatpush1.bf16.msra.mxu0 0
        %548 = vmatprep.subr.bf16.mxu0 0
        %549 = vmatpush1.bf16.msra.mxu0 0
        %550 = vmatprep.subr.bf16.mxu0 0
        %551 = vmatpush1.bf16.msra.mxu0 0
        %552 = vmatprep.subr.bf16.mxu0 0
        %553 = vmatpush1.bf16.msra.mxu0 0
        %554 = vmatprep.subr.bf16.mxu0 0
        %555 = vmatpush1.bf16.msra.mxu0 0
        %556 = vmatprep.subr.bf16.mxu0 0
        %557 = vmatpush1.bf16.msra.mxu0 0
        %558 = vmatprep.subr.bf16.mxu0 0
        %559 = vmatpush1.bf16.msra.mxu0 0
        %560 = vmatprep.subr.bf16.mxu0 0
        %561 = vmatpush1.bf16.msra.mxu0 0
        %562 = vmatprep.subr.bf16.mxu0 0
        %563 = vmatpush1.bf16.msra.mxu0 0
        %564 = vmatprep.subr.bf16.mxu0 0
        %565 = vmatpush1.bf16.msra.mxu0 0
        %566 = vmatprep.subr.bf16.mxu0 0
        %567 = vmatpush1.bf16.msra.mxu0 0
        %568 = vmatprep.subr.bf16.mxu0 0
        %569 = vmatpush1.bf16.msra.mxu0 0
        %570 = vmatprep.subr.bf16.mxu0 0
        %571 = vmatpush1.bf16.msra.mxu0 0
        %572 = vmatprep.subr.bf16.mxu0 0
        %573 = vmatpush1.bf16.msra.mxu0 0
        %574 = vmatprep.mubr.bf16.mxu0 0
        %575 = vmatmul.mubr.bf16.gmra.mrb[0].mxu0 %v537
        %v576 = vpop.f32.mrb[0].mxu0
        %v577 = vadd.f32 %v508, %v576
        %v578 = vpop.f32.mrb[0].mxu0
        %v579 = vadd.f32 %v508, %v578
        %v580 = vpop.f32.mrb[0].mxu0
        %v581 = vadd.f32 %v513, %v580
        %v582 = vpop.f32.mrb[0].mxu0
        %v583 = vadd.f32 %v513, %v582
        %584 = vmatprep.mubr.bf16.mxu0 0
        %585 = vmatmul.mubr.bf16.gmra.mrb[0].mxu0 %v540
        %v586 = vpop.f32.mrb[0].mxu0
        %v587 = vadd.f32 %v518, %v586
        %v588 = vpop.f32.mrb[0].mxu0
        %v589 = vadd.f32 %v518, %v588
        %v590 = vpop.f32.mrb[0].mxu0
        %v591 = vadd.f32 %v523, %v590
        %v592 = vpop.f32.mrb[0].mxu0
        %v593 = vadd.f32 %v523, %v592
        %594 = vdwg.mxu0
        %595 = vmatprep.subr.bf16.mxu0 %v500
        %596 = vmatpush1.bf16.msra.mxu0 %v499
        %597 = vmatprep.subr.bf16.mxu0 %v504
        %598 = vmatpush1.bf16.msra.mxu0 %v503
        %599 = vmatprep.subr.bf16.mxu0 0
        %600 = vmatpush1.bf16.msra.mxu0 0
        %601 = vmatprep.subr.bf16.mxu0 0
        %602 = vmatpush1.bf16.msra.mxu0 0
        %603 = vmatprep.subr.bf16.mxu0 0
        %604 = vmatpush1.bf16.msra.mxu0 0
        %605 = vmatprep.subr.bf16.mxu0 0
        %606 = vmatpush1.bf16.msra.mxu0 0
        %607 = vmatprep.subr.bf16.mxu0 0
        %608 = vmatpush1.bf16.msra.mxu0 0
        %609 = vmatprep.subr.bf16.mxu0 0
        %610 = vmatpush1.bf16.msra.mxu0 0
        %611 = vmatprep.subr.bf16.mxu0 0
        %612 = vmatpush1.bf16.msra.mxu0 0
        %613 = vmatprep.subr.bf16.mxu0 0
        %614 = vmatpush1.bf16.msra.mxu0 0
        %615 = vmatprep.subr.bf16.mxu0 0
        %616 = vmatpush1.bf16.msra.mxu0 0
        %617 = vmatprep.subr.bf16.mxu0 0
        %618 = vmatpush1.bf16.msra.mxu0 0
        %619 = vmatprep.subr.bf16.mxu0 0
        %620 = vmatpush1.bf16.msra.mxu0 0
        %621 = vmatprep.subr.bf16.mxu0 0
        %622 = vmatpush1.bf16.msra.mxu0 0
        %623 = vmatprep.subr.bf16.mxu0 0
        %624 = vmatpush1.bf16.msra.mxu0 0
        %625 = vmatprep.subr.bf16.mxu0 0
        %626 = vmatpush1.bf16.msra.mxu0 0
        %627 = vmatprep.mubr.bf16.mxu0 0
        %628 = vmatmul.mubr.bf16.gmra.mrb[0].mxu0 %v537
        %v629 = vpop.f32.mrb[0].mxu0
        %v630 = vadd.f32 %v508, %v629
        %v631 = vpop.f32.mrb[0].mxu0
        %v632 = vadd.f32 %v508, %v631
        %v633 = vpop.f32.mrb[0].mxu0
        %v634 = vadd.f32 %v513, %v633
        %v635 = vpop.f32.mrb[0].mxu0
        %v636 = vadd.f32 %v513, %v635
        %637 = vmatprep.mubr.bf16.mxu0 0
        %638 = vmatmul.mubr.bf16.gmra.mrb[0].mxu0 %v540
        %v639 = vpop.f32.mrb[0].mxu0
        %v640 = vadd.f32 %v518, %v639
        %v641 = vpop.f32.mrb[0].mxu0
        %v642 = vadd.f32 %v518, %v641
        %v643 = vpop.f32.mrb[0].mxu0
        %v644 = vadd.f32 %v523, %v643
        %v645 = vpop.f32.mrb[0].mxu0
        %v646 = vadd.f32 %v523, %v645
        %647 = vdwg.mxu0
        %v648 = vpack.c.bf16 %v581, %v577
        %v649 = vpack.c.bf16 %v583, %v579
        %v650 = vpack.c.bf16 %v634, %v630
        %v651 = vpack.c.bf16 %v636, %v632
        %v652 = vpack.c.bf16 %v591, %v587
        %v653 = vpack.c.bf16 %v593, %v589
        %v654 = vpack.c.bf16 %v644, %v640
        %v655 = vpack.c.bf16 %v646, %v642
        %v656 = vtanh.bf16.pop %v648
        %v657 = vtanh.bf16.pop %v649
        %v658 = vtanh.bf16.pop %v650
        %v659 = vtanh.bf16.pop %v651
        %v660 = vtanh.bf16.pop %v652
        %v661 = vtanh.bf16.pop %v653
        %v662 = vtanh.bf16.pop %v654
        %v663 = vtanh.bf16.pop %v655
        %v664 = vunpack.c.l.bf16 %v656
        %v665 = vunpack.c.l.bf16 %v657
        %v666 = vunpack.c.l.bf16 %v658
        %v667 = vunpack.c.l.bf16 %v659
        %v668 = vunpack.c.h.bf16 %v656
        %v669 = vunpack.c.h.bf16 %v657
        %v670 = vunpack.c.h.bf16 %v658
        %v671 = vunpack.c.h.bf16 %v659
        %v672 = vunpack.c.l.bf16 %v660
        %v673 = vunpack.c.l.bf16 %v661
        %v674 = vunpack.c.l.bf16 %v662
        %v675 = vunpack.c.l.bf16 %v663
        %v676 = vunpack.c.h.bf16 %v660
        %v677 = vunpack.c.h.bf16 %v661
        %v678 = vunpack.c.h.bf16 %v662
        %v679 = vunpack.c.h.bf16 %v663
        %681 = vset.pattern.permute.xlu0 0
        %682 = vperm.xlu0 %681, %v317
        %v683 = vpop.permute.xlu0 %682
        %686 = vset.pattern.permute.xlu0 0
        %687 = vperm.xlu0 %686, %v318
        %v688 = vpop.permute.xlu0 %687
        %691 = vset.pattern.permute.xlu0 0
        %692 = vperm.xlu0 %691, %v319
        %v693 = vpop.permute.xlu0 %692
        %696 = vset.pattern.permute.xlu0 0
        %697 = vperm.xlu0 %696, %v320
        %v698 = vpop.permute.xlu0 %697
        %v700 = vmul.f32 %v664, %v683
        %v701 = vmul.f32 %v665, %v683
        %v702 = vmul.f32 %v666, %v683
        %v703 = vmul.f32 %v667, %v683
        %v704 = vmul.f32 %v668, %v688
        %v705 = vmul.f32 %v669, %v688
        %v706 = vmul.f32 %v670, %v688
        %v707 = vmul.f32 %v671, %v688
        %v708 = vmul.f32 %v672, %v693
        %v709 = vmul.f32 %v673, %v693
        %v710 = vmul.f32 %v674, %v693
        %v711 = vmul.f32 %v675, %v693
        %v712 = vmul.f32 %v676, %v698
        %v713 = vmul.f32 %v677, %v698
        %v714 = vmul.f32 %v678, %v698
        %v715 = vmul.f32 %v679, %v698
        %v716 = vadd.f32 %v700, %v704
        %v717 = vadd.f32 %v716, %v708
        %v718 = vadd.f32 %v717, %v712
        %v719 = vrot.slane %v718, 4
        %v720 = vadd.f32 %v718, %v719
        %v721 = vrot.slane %v720, 2
        %v722 = vadd.f32 %v720, %v721
        %v723 = vrot.slane %v722, 1
        %v724 = vadd.f32 %v722, %v723
        %v725 = vadd.f32 %v701, %v705
        %v726 = vadd.f32 %v725, %v709
        %v727 = vadd.f32 %v726, %v713
        %v728 = vrot.slane %v727, 4
        %v729 = vadd.f32 %v727, %v728
        %v730 = vrot.slane %v729, 2
        %v731 = vadd.f32 %v729, %v730
        %v732 = vrot.slane %v731, 1
        %v733 = vadd.f32 %v731, %v732
        %v734 = vadd.f32 %v702, %v706
        %v735 = vadd.f32 %v734, %v710
        %v736 = vadd.f32 %v735, %v714
        %v737 = vrot.slane %v736, 4
        %v738 = vadd.f32 %v736, %v737
        %v739 = vrot.slane %v738, 2
        %v740 = vadd.f32 %v738, %v739
        %v741 = vrot.slane %v740, 1
        %v742 = vadd.f32 %v740, %v741
        %v743 = vadd.f32 %v703, %v707
        %v744 = vadd.f32 %v743, %v711
        %v745 = vadd.f32 %v744, %v715
        %v746 = vrot.slane %v745, 4
        %v747 = vadd.f32 %v745, %v746
        %v748 = vrot.slane %v747, 2
        %v749 = vadd.f32 %v747, %v748
        %v750 = vrot.slane %v749, 1
        %v751 = vadd.f32 %v749, %v750
        %v752 = vstv %s321
        %v753 = vadd.f32 %v724, %v752
        %v754 = vadd.f32 %v733, %v752
        %v755 = vadd.f32 %v742, %v752
        %v756 = vadd.f32 %v751, %v752
        %v761 = vcombine.low %v753, %v754
        %v762 = vcombine.low %v755, %v756
        %v764 = vunpack.c.l.s4 1966171168
        %v765 = vunpack.c.0.s8 %v764
        %v766 = vlaneseq
        %v767 = vshrl.u32 %v766, 7
        %v768 = vsub.s32 %v765, %v767
        %v769 = vrot.slane %v761, %v768
        %v771 = vunpack.c.l.s4 1966171168
        %v772 = vunpack.c.0.s8 %v771
        %v773 = vlaneseq
        %v774 = vshrl.u32 %v773, 7
        %v775 = vsub.s32 %v772, %v774
        %v776 = vrot.slane %v762, %v775
        %v777 = vcombine.low %v769, %v776
        %v779 = vunpack.c.l.s4 1966171168
        %v780 = vunpack.c.0.s8 %v779
        %v781 = vlaneseq
        %v782 = vshrl.u32 %v781, 7
        %v783 = vsub.s32 %v780, %v782
        %v784 = vrot.slane %v777, %v783
        %v786 = vlaneseq
        %vm787 = vcmp.ge.s32.totalorder %v786, 0
        %vm788 = vcmp.lt.s32.totalorder %v786, 512
        %vm789 = vmand %vm787, %vm788
        %790 = vst.msk [vmem:[%s297] sm:$0xf] %vm789, %v784
        %v791 = vld [vmem:[%s267 + $0x10] sm:$0xff]
        %v792 = vld [vmem:[%s267 + $0x18] sm:$0xff]
        %v793 = vld [vmem:[%s267 + $0x30] sm:$0xff]
        %v794 = vld [vmem:[%s267 + $0x38] sm:$0xff]
        %v799 = vunpack.c.l.b16 %v791
        %v800 = vunpack.c.h.b16 %v791
        %v801 = vunpack.c.l.b16 %v792
        %v802 = vunpack.c.h.b16 %v792
        %v803 = vunpack.c.l.b16 %v793
        %v804 = vunpack.c.h.b16 %v793
        %v805 = vunpack.c.l.b16 %v794
        %v806 = vunpack.c.h.b16 %v794
        %v807 = vpack.c.b16 %v803, %v799
        %v808 = vpack.c.b16 %v804, %v800
        %v809 = vpack.c.b16 %v805, %v801
        %v810 = vpack.c.b16 %v806, %v802
        %815 = vmatprep.subr.bf16.mxu0 %v808
        %816 = vmatpush1.bf16.msra.mxu0 %v807
        %817 = vmatprep.subr.bf16.mxu0 0
        %818 = vmatpush1.bf16.msra.mxu0 0
        %819 = vmatprep.subr.bf16.mxu0 0
        %820 = vmatpush1.bf16.msra.mxu0 0
        %821 = vmatprep.subr.bf16.mxu0 0
        %822 = vmatpush1.bf16.msra.mxu0 0
        %823 = vmatprep.subr.bf16.mxu0 0
        %824 = vmatpush1.bf16.msra.mxu0 0
        %825 = vmatprep.subr.bf16.mxu0 0
        %826 = vmatpush1.bf16.msra.mxu0 0
        %827 = vmatprep.subr.bf16.mxu0 0
        %828 = vmatpush1.bf16.msra.mxu0 0
        %829 = vmatprep.subr.bf16.mxu0 0
        %830 = vmatpush1.bf16.msra.mxu0 0
        %831 = vmatprep.subr.bf16.mxu0 0
        %832 = vmatpush1.bf16.msra.mxu0 0
        %833 = vmatprep.subr.bf16.mxu0 0
        %834 = vmatpush1.bf16.msra.mxu0 0
        %835 = vmatprep.subr.bf16.mxu0 0
        %836 = vmatpush1.bf16.msra.mxu0 0
        %837 = vmatprep.subr.bf16.mxu0 0
        %838 = vmatpush1.bf16.msra.mxu0 0
        %839 = vmatprep.subr.bf16.mxu0 0
        %840 = vmatpush1.bf16.msra.mxu0 0
        %841 = vmatprep.subr.bf16.mxu0 0
        %842 = vmatpush1.bf16.msra.mxu0 0
        %843 = vmatprep.subr.bf16.mxu0 0
        %844 = vmatpush1.bf16.msra.mxu0 0
        %845 = vmatprep.subr.bf16.mxu0 0
        %846 = vmatpush1.bf16.msra.mxu0 0
        %847 = vmatprep.mubr.bf16.mxu0 0
        %848 = vmatmul.mubr.bf16.gmra.mrb[0].mxu0 %v378
        %v849 = vpop.f32.mrb[0].mxu0
        %v850 = vadd.f32 %v329, %v849
        %v851 = vpop.f32.mrb[0].mxu0
        %v852 = vadd.f32 %v329, %v851
        %v853 = vpop.f32.mrb[0].mxu0
        %v854 = vadd.f32 %v334, %v853
        %v855 = vpop.f32.mrb[0].mxu0
        %v856 = vadd.f32 %v334, %v855
        %857 = vmatprep.mubr.bf16.mxu0 0
        %858 = vmatmul.mubr.bf16.gmra.mrb[0].mxu0 %v381
        %v859 = vpop.f32.mrb[0].mxu0
        %v860 = vadd.f32 %v339, %v859
        %v861 = vpop.f32.mrb[0].mxu0
        %v862 = vadd.f32 %v339, %v861
        %v863 = vpop.f32.mrb[0].mxu0
        %v864 = vadd.f32 %v344, %v863
        %v865 = vpop.f32.mrb[0].mxu0
        %v866 = vadd.f32 %v344, %v865
        %867 = vdwg.mxu0
        %868 = vmatprep.subr.bf16.mxu0 %v810
        %869 = vmatpush1.bf16.msra.mxu0 %v809
        %870 = vmatprep.subr.bf16.mxu0 0
        %871 = vmatpush1.bf16.msra.mxu0 0
        %872 = vmatprep.subr.bf16.mxu0 0
        %873 = vmatpush1.bf16.msra.mxu0 0
        %874 = vmatprep.subr.bf16.mxu0 0
        %875 = vmatpush1.bf16.msra.mxu0 0
        %876 = vmatprep.subr.bf16.mxu0 0
        %877 = vmatpush1.bf16.msra.mxu0 0
        %878 = vmatprep.subr.bf16.mxu0 0
        %879 = vmatpush1.bf16.msra.mxu0 0
        %880 = vmatprep.subr.bf16.mxu0 0
        %881 = vmatpush1.bf16.msra.mxu0 0
        %882 = vmatprep.subr.bf16.mxu0 0
        %883 = vmatpush1.bf16.msra.mxu0 0
        %884 = vmatprep.subr.bf16.mxu0 0
        %885 = vmatpush1.bf16.msra.mxu0 0
        %886 = vmatprep.subr.bf16.mxu0 0
        %887 = vmatpush1.bf16.msra.mxu0 0
        %888 = vmatprep.subr.bf16.mxu0 0
        %889 = vmatpush1.bf16.msra.mxu0 0
        %890 = vmatprep.subr.bf16.mxu0 0
        %891 = vmatpush1.bf16.msra.mxu0 0
        %892 = vmatprep.subr.bf16.mxu0 0
        %893 = vmatpush1.bf16.msra.mxu0 0
        %894 = vmatprep.subr.bf16.mxu0 0
        %895 = vmatpush1.bf16.msra.mxu0 0
        %896 = vmatprep.subr.bf16.mxu0 0
        %897 = vmatpush1.bf16.msra.mxu0 0
        %898 = vmatprep.subr.bf16.mxu0 0
        %899 = vmatpush1.bf16.msra.mxu0 0
        %900 = vmatprep.mubr.bf16.mxu0 0
        %901 = vmatmul.mubr.bf16.gmra.mrb[0].mxu0 %v378
        %v902 = vpop.f32.mrb[0].mxu0
        %v903 = vadd.f32 %v329, %v902
        %v904 = vpop.f32.mrb[0].mxu0
        %v905 = vadd.f32 %v329, %v904
        %v906 = vpop.f32.mrb[0].mxu0
        %v907 = vadd.f32 %v334, %v906
        %v908 = vpop.f32.mrb[0].mxu0
        %v909 = vadd.f32 %v334, %v908
        %910 = vmatprep.mubr.bf16.mxu0 0
        %911 = vmatmul.mubr.bf16.gmra.mrb[0].mxu0 %v381
        %v912 = vpop.f32.mrb[0].mxu0
        %v913 = vadd.f32 %v339, %v912
        %v914 = vpop.f32.mrb[0].mxu0
        %v915 = vadd.f32 %v339, %v914
        %v916 = vpop.f32.mrb[0].mxu0
        %v917 = vadd.f32 %v344, %v916
        %v918 = vpop.f32.mrb[0].mxu0
        %v919 = vadd.f32 %v344, %v918
        %920 = vdwg.mxu0
        %v921 = vpack.c.bf16 %v854, %v850
        %v922 = vpack.c.bf16 %v856, %v852
        %v923 = vpack.c.bf16 %v907, %v903
        %v924 = vpack.c.bf16 %v909, %v905
        %v925 = vpack.c.bf16 %v864, %v860
        %v926 = vpack.c.bf16 %v866, %v862
        %v927 = vpack.c.bf16 %v917, %v913
        %v928 = vpack.c.bf16 %v919, %v915
        %v929 = vtanh.bf16.pop %v921
        %v930 = vtanh.bf16.pop %v922
        %v931 = vtanh.bf16.pop %v923
        %v932 = vtanh.bf16.pop %v924
        %v933 = vtanh.bf16.pop %v925
        %v934 = vtanh.bf16.pop %v926
        %v935 = vtanh.bf16.pop %v927
        %v936 = vtanh.bf16.pop %v928
        %937 = vmatprep.subr.bf16.mxu0 %v930
        %938 = vmatpush1.bf16.msra.mxu0 %v929
        %939 = vmatprep.subr.bf16.mxu0 %v934
        %940 = vmatpush1.bf16.msra.mxu0 %v933
        %941 = vmatprep.subr.bf16.mxu0 0
        %942 = vmatpush1.bf16.msra.mxu0 0
        %943 = vmatprep.subr.bf16.mxu0 0
        %944 = vmatpush1.bf16.msra.mxu0 0
        %945 = vmatprep.subr.bf16.mxu0 0
        %946 = vmatpush1.bf16.msra.mxu0 0
        %947 = vmatprep.subr.bf16.mxu0 0
        %948 = vmatpush1.bf16.msra.mxu0 0
        %949 = vmatprep.subr.bf16.mxu0 0
        %950 = vmatpush1.bf16.msra.mxu0 0
        %951 = vmatprep.subr.bf16.mxu0 0
        %952 = vmatpush1.bf16.msra.mxu0 0
        %953 = vmatprep.subr.bf16.mxu0 0
        %954 = vmatpush1.bf16.msra.mxu0 0
        %955 = vmatprep.subr.bf16.mxu0 0
        %956 = vmatpush1.bf16.msra.mxu0 0
        %957 = vmatprep.subr.bf16.mxu0 0
        %958 = vmatpush1.bf16.msra.mxu0 0
        %959 = vmatprep.subr.bf16.mxu0 0
        %960 = vmatpush1.bf16.msra.mxu0 0
        %961 = vmatprep.subr.bf16.mxu0 0
        %962 = vmatpush1.bf16.msra.mxu0 0
        %963 = vmatprep.subr.bf16.mxu0 0
        %964 = vmatpush1.bf16.msra.mxu0 0
        %965 = vmatprep.subr.bf16.mxu0 0
        %966 = vmatpush1.bf16.msra.mxu0 0
        %967 = vmatprep.subr.bf16.mxu0 0
        %968 = vmatpush1.bf16.msra.mxu0 0
        %969 = vmatprep.mubr.bf16.mxu0 0
        %970 = vmatmul.mubr.bf16.gmra.mrb[0].mxu0 %v537
        %v971 = vpop.f32.mrb[0].mxu0
        %v972 = vadd.f32 %v508, %v971
        %v973 = vpop.f32.mrb[0].mxu0
        %v974 = vadd.f32 %v508, %v973
        %v975 = vpop.f32.mrb[0].mxu0
        %v976 = vadd.f32 %v513, %v975
        %v977 = vpop.f32.mrb[0].mxu0
        %v978 = vadd.f32 %v513, %v977
        %979 = vmatprep.mubr.bf16.mxu0 0
        %980 = vmatmul.mubr.bf16.gmra.mrb[0].mxu0 %v540
        %v981 = vpop.f32.mrb[0].mxu0
        %v982 = vadd.f32 %v518, %v981
        %v983 = vpop.f32.mrb[0].mxu0
        %v984 = vadd.f32 %v518, %v983
        %v985 = vpop.f32.mrb[0].mxu0
        %v986 = vadd.f32 %v523, %v985
        %v987 = vpop.f32.mrb[0].mxu0
        %v988 = vadd.f32 %v523, %v987
        %989 = vdwg.mxu0
        %990 = vmatprep.subr.bf16.mxu0 %v932
        %991 = vmatpush1.bf16.msra.mxu0 %v931
        %992 = vmatprep.subr.bf16.mxu0 %v936
        %993 = vmatpush1.bf16.msra.mxu0 %v935
        %994 = vmatprep.subr.bf16.mxu0 0
        %995 = vmatpush1.bf16.msra.mxu0 0
        %996 = vmatprep.subr.bf16.mxu0 0
        %997 = vmatpush1.bf16.msra.mxu0 0
        %998 = vmatprep.subr.bf16.mxu0 0
        %999 = vmatpush1.bf16.msra.mxu0 0
        %1000 = vmatprep.subr.bf16.mxu0 0
        %1001 = vmatpush1.bf16.msra.mxu0 0
        %1002 = vmatprep.subr.bf16.mxu0 0
        %1003 = vmatpush1.bf16.msra.mxu0 0
        %1004 = vmatprep.subr.bf16.mxu0 0
        %1005 = vmatpush1.bf16.msra.mxu0 0
        %1006 = vmatprep.subr.bf16.mxu0 0
        %1007 = vmatpush1.bf16.msra.mxu0 0
        %1008 = vmatprep.subr.bf16.mxu0 0
        %1009 = vmatpush1.bf16.msra.mxu0 0
        %1010 = vmatprep.subr.bf16.mxu0 0
        %1011 = vmatpush1.bf16.msra.mxu0 0
        %1012 = vmatprep.subr.bf16.mxu0 0
        %1013 = vmatpush1.bf16.msra.mxu0 0
        %1014 = vmatprep.subr.bf16.mxu0 0
        %1015 = vmatpush1.bf16.msra.mxu0 0
        %1016 = vmatprep.subr.bf16.mxu0 0
        %1017 = vmatpush1.bf16.msra.mxu0 0
        %1018 = vmatprep.subr.bf16.mxu0 0
        %1019 = vmatpush1.bf16.msra.mxu0 0
        %1020 = vmatprep.subr.bf16.mxu0 0
        %1021 = vmatpush1.bf16.msra.mxu0 0
        %1022 = vmatprep.mubr.bf16.mxu0 0
        %1023 = vmatmul.mubr.bf16.gmra.mrb[0].mxu0 %v537
        %v1024 = vpop.f32.mrb[0].mxu0
        %v1025 = vadd.f32 %v508, %v1024
        %v1026 = vpop.f32.mrb[0].mxu0
        %v1027 = vadd.f32 %v508, %v1026
        %v1028 = vpop.f32.mrb[0].mxu0
        %v1029 = vadd.f32 %v513, %v1028
        %v1030 = vpop.f32.mrb[0].mxu0
        %v1031 = vadd.f32 %v513, %v1030
        %1032 = vmatprep.mubr.bf16.mxu0 0
        %1033 = vmatmul.mubr.bf16.gmra.mrb[0].mxu0 %v540
        %v1034 = vpop.f32.mrb[0].mxu0
        %v1035 = vadd.f32 %v518, %v1034
        %v1036 = vpop.f32.mrb[0].mxu0
        %v1037 = vadd.f32 %v518, %v1036
        %v1038 = vpop.f32.mrb[0].mxu0
        %v1039 = vadd.f32 %v523, %v1038
        %v1040 = vpop.f32.mrb[0].mxu0
        %v1041 = vadd.f32 %v523, %v1040
        %1042 = vdwg.mxu0
        %v1043 = vpack.c.bf16 %v976, %v972
        %v1044 = vpack.c.bf16 %v978, %v974
        %v1045 = vpack.c.bf16 %v1029, %v1025
        %v1046 = vpack.c.bf16 %v1031, %v1027
        %v1047 = vpack.c.bf16 %v986, %v982
        %v1048 = vpack.c.bf16 %v988, %v984
        %v1049 = vpack.c.bf16 %v1039, %v1035
        %v1050 = vpack.c.bf16 %v1041, %v1037
        %v1051 = vtanh.bf16.pop %v1043
        %v1052 = vtanh.bf16.pop %v1044
        %v1053 = vtanh.bf16.pop %v1045
        %v1054 = vtanh.bf16.pop %v1046
        %v1055 = vtanh.bf16.pop %v1047
        %v1056 = vtanh.bf16.pop %v1048
        %v1057 = vtanh.bf16.pop %v1049
        %v1058 = vtanh.bf16.pop %v1050
        %v1059 = vunpack.c.l.bf16 %v1051
        %v1060 = vunpack.c.l.bf16 %v1052
        %v1061 = vunpack.c.l.bf16 %v1053
        %v1062 = vunpack.c.l.bf16 %v1054
        %v1063 = vunpack.c.h.bf16 %v1051
        %v1064 = vunpack.c.h.bf16 %v1052
        %v1065 = vunpack.c.h.bf16 %v1053
        %v1066 = vunpack.c.h.bf16 %v1054
        %v1067 = vunpack.c.l.bf16 %v1055
        %v1068 = vunpack.c.l.bf16 %v1056
        %v1069 = vunpack.c.l.bf16 %v1057
        %v1070 = vunpack.c.l.bf16 %v1058
        %v1071 = vunpack.c.h.bf16 %v1055
        %v1072 = vunpack.c.h.bf16 %v1056
        %v1073 = vunpack.c.h.bf16 %v1057
        %v1074 = vunpack.c.h.bf16 %v1058
        %v1075 = vmul.f32 %v1059, %v683
        %v1076 = vmul.f32 %v1060, %v683
        %v1077 = vmul.f32 %v1061, %v683
        %v1078 = vmul.f32 %v1062, %v683
        %v1079 = vmul.f32 %v1063, %v688
        %v1080 = vmul.f32 %v1064, %v688
        %v1081 = vmul.f32 %v1065, %v688
        %v1082 = vmul.f32 %v1066, %v688
        %v1083 = vmul.f32 %v1067, %v693
        %v1084 = vmul.f32 %v1068, %v693
        %v1085 = vmul.f32 %v1069, %v693
        %v1086 = vmul.f32 %v1070, %v693
        %v1087 = vmul.f32 %v1071, %v698
        %v1088 = vmul.f32 %v1072, %v698
        %v1089 = vmul.f32 %v1073, %v698
        %v1090 = vmul.f32 %v1074, %v698
        %v1091 = vadd.f32 %v1075, %v1079
        %v1092 = vadd.f32 %v1091, %v1083
        %v1093 = vadd.f32 %v1092, %v1087
        %v1094 = vrot.slane %v1093, 4
        %v1095 = vadd.f32 %v1093, %v1094
        %v1096 = vrot.slane %v1095, 2
        %v1097 = vadd.f32 %v1095, %v1096
        %v1098 = vrot.slane %v1097, 1
        %v1099 = vadd.f32 %v1097, %v1098
        %v1100 = vadd.f32 %v1076, %v1080
        %v1101 = vadd.f32 %v1100, %v1084
        %v1102 = vadd.f32 %v1101, %v1088
        %v1103 = vrot.slane %v1102, 4
        %v1104 = vadd.f32 %v1102, %v1103
        %v1105 = vrot.slane %v1104, 2
        %v1106 = vadd.f32 %v1104, %v1105
        %v1107 = vrot.slane %v1106, 1
        %v1108 = vadd.f32 %v1106, %v1107
        %v1109 = vadd.f32 %v1077, %v1081
        %v1110 = vadd.f32 %v1109, %v1085
        %v1111 = vadd.f32 %v1110, %v1089
        %v1112 = vrot.slane %v1111, 4
        %v1113 = vadd.f32 %v1111, %v1112
        %v1114 = vrot.slane %v1113, 2
        %v1115 = vadd.f32 %v1113, %v1114
        %v1116 = vrot.slane %v1115, 1
        %v1117 = vadd.f32 %v1115, %v1116
        %v1118 = vadd.f32 %v1078, %v1082
        %v1119 = vadd.f32 %v1118, %v1086
        %v1120 = vadd.f32 %v1119, %v1090
        %v1121 = vrot.slane %v1120, 4
        %v1122 = vadd.f32 %v1120, %v1121
        %v1123 = vrot.slane %v1122, 2
        %v1124 = vadd.f32 %v1122, %v1123
        %v1125 = vrot.slane %v1124, 1
        %v1126 = vadd.f32 %v1124, %v1125
        %v1127 = vadd.f32 %v1099, %v752
        %v1128 = vadd.f32 %v1108, %v752
        %v1129 = vadd.f32 %v1117, %v752
        %v1130 = vadd.f32 %v1126, %v752
        %v1135 = vcombine.low %v1127, %v1128
        %v1136 = vcombine.low %v1129, %v1130
        %v1138 = vunpack.c.l.s4 1966171168
        %v1139 = vunpack.c.0.s8 %v1138
        %v1140 = vlaneseq
        %v1141 = vshrl.u32 %v1140, 7
        %v1142 = vsub.s32 %v1139, %v1141
        %v1143 = vrot.slane %v1135, %v1142
        %v1145 = vunpack.c.l.s4 1966171168
        %v1146 = vunpack.c.0.s8 %v1145
        %v1147 = vlaneseq
        %v1148 = vshrl.u32 %v1147, 7
        %v1149 = vsub.s32 %v1146, %v1148
        %v1150 = vrot.slane %v1136, %v1149
        %v1151 = vcombine.low %v1143, %v1150
        %v1153 = vunpack.c.l.s4 1966171168
        %v1154 = vunpack.c.0.s8 %v1153
        %v1155 = vlaneseq
        %v1156 = vshrl.u32 %v1155, 7
        %v1157 = vsub.s32 %v1154, %v1156
        %v1158 = vrot.slane %v1151, %v1157
        %1160 = vst.msk [vmem:[%s297 + $0x4] sm:$0xf] %vm789, %v1158
        %s1161 = sand.u32 %s185, 1
        %s1162 = scalar_lea.sflag [#allocation5], %s1161
        %s1163 = sand.u32 %s185, 1
        %s1164 = smul.addr %s1163, 8
        %s1165 = scalar_lea.vmem [#allocation6], %s1164
        // Predicated region
        $region53: #{tpu_custom_call.1} parent=47 // pred_check
          %p1166 = pneg %p195
        $region54: #{tpu_custom_call.1} parent=47 // pred_check_branch
          %1168 = sbr.rel (%p1166) target = $region56
        $region55: #{tpu_custom_call.1} parent=47 // pred_region
          %s1169 = smul.u32 8, %s25
          %s1171 = ssub.s32 128, 128
          %1172 = vsyncadd %s1162, %s1171
          %s1173 = smul.addr %s1169, 16
          %s1174 = scalar_lea.hbm %s7, %s1173
          %s1176 = sshll.u32 %s1165, 4
          %s1177 = int_to_ptr.vmem [resolvable:$true] %s1176
          %1179 = dma.vmem_to_hbm [thread:$0]  %s1177, 128, %s1174, %s1162
        $region56: #{tpu_custom_call.1} parent=47 // pred_fallthru
          _
      $region48: #{tpu_custom_call.1} parent=5 // pred_fallthru
        _
      %p1180 = scmp.le.s32.totalorder 2, %s20
      // Predicated region
      $region57: #{tpu_custom_call.1} parent=5 // pred_check
        %p1181 = pneg %p1180
      $region58: #{tpu_custom_call.1} parent=5 // pred_check_branch
        %1183 = sbr.rel (%p1181) target = $region60
      $region59: #{tpu_custom_call.1} parent=5 // pred_region
        %s1184 = ssub.s32 %s20, 2
        // Predicated region
        $region61: #{tpu_custom_call.1} parent=59 // pred_check
          %p1185 = pneg %p201
        $region62: #{tpu_custom_call.1} parent=59 // pred_check_branch
          %1187 = sbr.rel (%p1185) target = $region64
        $region63: #{tpu_custom_call.1} parent=59 // pred_region
          %s1188 = sand.u32 %s186, 1
          %s1189 = scalar_lea.sflag [#allocation5], %s1188
          %s1190 = sand.u32 %s186, 1
          %s1191 = smul.addr %s1190, 8
          %s1192 = scalar_lea.vmem [#allocation6], %s1191
          %1193 = dma.done %s1189, 128
        $region64: #{tpu_custom_call.1} parent=59 // pred_fallthru
          _
      $region60: #{tpu_custom_call.1} parent=5 // pred_fallthru
        _
    $region6: #{tpu_custom_call.1} parent=1 // loop_footer
      %s24 = sadd.s32 1, %s20
    $region7: #{tpu_custom_call.1} parent=1 // loop_footer_branch
      %19 = sbr.rel target = $region3
    $region8: #{tpu_custom_call.1} parent=1 // loop_exit
      _
    %1194 = vsyncpa [#allocation4], 1
    %s1195 = scalar_lea.sflag [#allocation4], 1
    %1196 = vsyncpa %s1195, 1
    %1197 = vsyncpa [#allocation5], 1
    %s1198 = scalar_lea.sflag [#allocation5], 1
    %1199 = vsyncpa %s1198, 1

</llo_original>
